<compile_context>
chip_gen: v7x
topology: tpu7x:2x2x1
jax: 0.10.0
libtpu: 0.0.40
codegen_flags: <defaults>
</compile_context>

<pallas_src>
import jax
import jax.numpy as jnp
from jax.experimental import pallas as pl
from jax.experimental.pallas import tpu as pltpu


_MARGIN = 0.2  # MyLoss.forward hard-codes margin=0.2 regardless of __init__ arg.


def _myloss_kernel(img_ref, pos_gcn_ref, neg_gcn_ref, out_ref):
    # Upcast in-kernel so bf16 callers still reduce in f32 (no-op for f32).
    img   = img_ref[...].astype(jnp.float32)
    pos_g = pos_gcn_ref[...].astype(jnp.float32)
    neg_g = neg_gcn_ref[...].astype(jnp.float32)

    # Row-wise dot products and squared norms (lane reductions -> (TN, 1)).
    pos_dot = jnp.sum(img * pos_g, axis=-1, keepdims=True)
    neg_dot = jnp.sum(img * neg_g, axis=-1, keepdims=True)
    pos_ss  = jnp.sum(pos_g * pos_g, axis=-1, keepdims=True)
    neg_ss  = jnp.sum(neg_g * neg_g, axis=-1, keepdims=True)

    # score = <img, g> / ||g||  folded as a per-row rsqrt (EUP slot, VPU-free).
    pos_score = pos_dot * jax.lax.rsqrt(pos_ss)
    neg_score = neg_dot * jax.lax.rsqrt(neg_ss)

    out_ref[...] = jnp.maximum(neg_score - pos_score + _MARGIN, 0.0)


def _sublane_align(itemsize):
    # Native packed-sublane count: 8 rows for 4-byte, 16 for 2-byte, 32 for 1-byte.
    return {4: 8, 2: 16, 1: 32}.get(int(itemsize), 8)


def _device_budgets():
    """(input double-buffer byte budget, vmem_limit_bytes or None) per TPU gen."""
    try:
        kind = jax.devices()[0].device_kind.lower()
    except Exception:
        kind = ""
    if "v7" in kind:
        # 64 MiB physical VMEM: bigger steps hide the 0.35 us overhead at 3.2 TB/s,
        # and we explicitly raise the scoped limit with headroom.
        return 24 << 20, 48 << 20
    if "v6" in kind or "trillium" in kind:
        # 24 MiB of input buffers still fits the 32 MiB default scoped limit.
        return 24 << 20, None
    # v5e / unknown: stay under the 16 MiB default scoped limit with headroom
    # for the compiler's in-kernel f32 upcast temporaries.
    return 12 << 20, None


def _choose_block_rows(n, d, itemsize, input_budget_bytes):
    # 3 live inputs x 2 pipeline buffers x (TN, D) must fit the input budget.
    per_row = 3 * 2 * d * itemsize
    tn = max(1, input_budget_bytes // per_row)
    if tn >= n:
        return int(n)
    align = _sublane_align(itemsize)
    tn = max(align, (tn // align) * align)
    return int(min(tn, n))


def my_loss(image_feat, pos_gcn_emb, neg_gcn_emb,
            pos_text_feat=None, neg_text_feat=None, *, block_rows=None):
    # pos_text_feat / neg_text_feat are kept for API parity with the PyTorch
    # module but are dead inputs (scaled by 0.0); valid for finite inputs.
    del pos_text_feat, neg_text_feat

    n, d = image_feat.shape
    itemsize = jnp.dtype(image_feat.dtype).itemsize
    input_budget, vmem_limit = _device_budgets()

    if block_rows is None:
        block_rows = _choose_block_rows(n, d, itemsize, input_budget)
    else:
        block_rows = int(min(int(block_rows), n))
        if block_rows < n:
            # Multi-tile grids must keep the sublane dim aligned (8,128) rule;
            # also align to the dtype's packed-sublane count to avoid relayouts.
            align = _sublane_align(itemsize)
            block_rows = max(align, (block_rows // align) * align)

    grid = (pl.cdiv(n, block_rows),)

    # Advisory cost so XLA schedules/overlaps this custom call sensibly.
    cost = pl.CostEstimate(
        flops=8 * n * d,             # 4 fused mul+add reductions over (N, D)
        transcendentals=2 * n,       # two rsqrt per row
        bytes_accessed=3 * n * d * itemsize + 4 * n,
    )

    # TODO(synk): for very wide D where 6 * block_rows * D * itemsize cannot fit
    # the scoped VMEM even at block_rows == sublane alignment, add a second
    # ("arbitrary") grid axis over D-chunks with pl.when-gated scratch
    # accumulators for pos_dot/neg_dot/pos_ss/neg_ss. Not needed at these sizes.

    in_spec = pl.BlockSpec((block_rows, d), lambda i: (i, 0))
    out = pl.pallas_call(
        _myloss_kernel,
        out_shape=jax.ShapeDtypeStruct((n, 1), jnp.float32),
        grid=grid,
        in_specs=[in_spec, in_spec, in_spec],
        out_specs=pl.BlockSpec((block_rows, 1), lambda i: (i, 0)),
        compiler_params=pltpu.CompilerParams(
            dimension_semantics=("parallel",),   # rows independent; v7x megacore
            vmem_limit_bytes=vmem_limit,
        ),
        cost_estimate=cost,
    )(image_feat, pos_gcn_emb, neg_gcn_emb)
    return out[:, 0]


def _reference(image_feat, pos_gcn_emb, neg_gcn_emb, pos_text_feat, neg_text_feat):
    # Pure-JAX mirror of MyLoss.forward (full matmul + diag, exact precision).
    hi = jax.lax.Precision.HIGHEST
    pos_g = pos_gcn_emb / jnp.linalg.norm(pos_gcn_emb, axis=-1, keepdims=True)
    neg_g = neg_gcn_emb / jnp.linalg.norm(neg_gcn_emb, axis=-1, keepdims=True)
    pos_text = pos_text_feat * 0.0 + 1.0 * pos_g
    neg_text = neg_text_feat * 0.0 + 1.0 * neg_g
    img2pos = jnp.matmul(image_feat, pos_text.T, precision=hi)
    img2neg = jnp.matmul(image_feat, neg_text.T, precision=hi)
    pos_score = jnp.diag(img2pos)
    neg_score = jnp.diag(img2neg)
    return jnp.maximum(neg_score - pos_score + _MARGIN, 0.0)


if __name__ == "__main__":
    N, D = 24, 128  # small: 24 image/text pairs, 128-dim features
    key = jax.random.PRNGKey(0)
    k1, k2, k3, k4, k5 = jax.random.split(key, 5)
    image_feat    = jax.random.normal(k1, (N, D), dtype=jnp.float32)
    pos_gcn_emb   = jax.random.normal(k2, (N, D), dtype=jnp.float32)
    neg_gcn_emb   = jax.random.normal(k3, (N, D), dtype=jnp.float32)
    pos_text_feat = jax.random.normal(k4, (N, D), dtype=jnp.float32)
    neg_text_feat = jax.random.normal(k5, (N, D), dtype=jnp.float32)

    ref = _reference(image_feat, pos_gcn_emb, neg_gcn_emb,
                     pos_text_feat, neg_text_feat)

    # 1) Auto (byte-budgeted) tile size: single full-batch block at these shapes.
    loss = my_loss(image_feat, pos_gcn_emb, neg_gcn_emb,
                   pos_text_feat, neg_text_feat)
    jax.block_until_ready(loss)
    assert loss.shape == (N,)
    assert jnp.allclose(loss, ref, atol=1e-5, rtol=1e-5)

    # 2) Forced multi-tile path with a ragged tail (grid=(2,), last block
    #    half-full) to exercise the pipelined / parallel grid code path and the
    #    user-supplied block_rows rounding.
    loss_tiled = my_loss(image_feat, pos_gcn_emb, neg_gcn_emb,
                         pos_text_feat, neg_text_feat, block_rows=16)
    jax.block_until_ready(loss_tiled)
    assert loss_tiled.shape == (N,)
    assert jnp.allclose(loss_tiled, ref, atol=1e-5, rtol=1e-5)

    print("KERNEL_OK")
</pallas_src>

<mosaic_0001>
module attributes {stable_mosaic.version = 11 : i64} {
  func.func @_myloss_kernel(%arg0: i32, %arg1: memref<24x128xf32, #tpu.memory_space<vmem>>, %arg2: memref<24x128xf32, #tpu.memory_space<vmem>>, %arg3: memref<24x128xf32, #tpu.memory_space<vmem>>, %arg4: memref<24x1xf32, #tpu.memory_space<vmem>>) attributes {dimension_semantics = [#tpu.dimension_semantics<parallel>], iteration_bounds = array<i64: 1>, scalar_prefetch = 0 : i64, scratch_operands = 0 : i64, tpu.core_type = #tpu.core_type<tc>, window_params = [{transform_indices = @transform_0, window_bounds = array<i64: 24, 128>}, {transform_indices = @transform_1, window_bounds = array<i64: 24, 128>}, {transform_indices = @transform_2, window_bounds = array<i64: 24, 128>}, {transform_indices = @transform_3, window_bounds = array<i64: 24, 1>}]} {
    %c0 = arith.constant 0 : index
    %c0_0 = arith.constant 0 : index
    %0 = vector.load %arg1[%c0, %c0_0] : memref<24x128xf32, #tpu.memory_space<vmem>>, vector<24x128xf32>
    %c0_1 = arith.constant 0 : index
    %c0_2 = arith.constant 0 : index
    %1 = vector.load %arg2[%c0_1, %c0_2] : memref<24x128xf32, #tpu.memory_space<vmem>>, vector<24x128xf32>
    %c0_3 = arith.constant 0 : index
    %c0_4 = arith.constant 0 : index
    %2 = vector.load %arg3[%c0_3, %c0_4] : memref<24x128xf32, #tpu.memory_space<vmem>>, vector<24x128xf32>
    %3 = arith.mulf %0, %1 : vector<24x128xf32>
    %cst = arith.constant dense<0.000000e+00> : vector<24xf32>
    %4 = vector.multi_reduction <add>, %3, %cst [1] : vector<24x128xf32> to vector<24xf32>
    %5 = vector.shape_cast %4 : vector<24xf32> to vector<24x1xf32>
    %6 = arith.mulf %0, %2 : vector<24x128xf32>
    %cst_5 = arith.constant dense<0.000000e+00> : vector<24xf32>
    %7 = vector.multi_reduction <add>, %6, %cst_5 [1] : vector<24x128xf32> to vector<24xf32>
    %8 = vector.shape_cast %7 : vector<24xf32> to vector<24x1xf32>
    %9 = arith.mulf %1, %1 : vector<24x128xf32>
    %cst_6 = arith.constant dense<0.000000e+00> : vector<24xf32>
    %10 = vector.multi_reduction <add>, %9, %cst_6 [1] : vector<24x128xf32> to vector<24xf32>
    %11 = vector.shape_cast %10 : vector<24xf32> to vector<24x1xf32>
    %12 = arith.mulf %2, %2 : vector<24x128xf32>
    %cst_7 = arith.constant dense<0.000000e+00> : vector<24xf32>
    %13 = vector.multi_reduction <add>, %12, %cst_7 [1] : vector<24x128xf32> to vector<24xf32>
    %14 = vector.shape_cast %13 : vector<24xf32> to vector<24x1xf32>
    %15 = math.rsqrt %11 : vector<24x1xf32>
    %16 = arith.mulf %5, %15 : vector<24x1xf32>
    %17 = math.rsqrt %14 : vector<24x1xf32>
    %18 = arith.mulf %8, %17 : vector<24x1xf32>
    %19 = arith.subf %18, %16 : vector<24x1xf32>
    %cst_8 = arith.constant 2.000000e-01 : f32
    %20 = vector.broadcast %cst_8 : f32 to vector<24x1xf32>
    %21 = arith.addf %19, %20 : vector<24x1xf32>
    %cst_9 = arith.constant 0.000000e+00 : f32
    %22 = vector.broadcast %cst_9 : f32 to vector<24x1xf32>
    %23 = arith.maximumf %21, %22 : vector<24x1xf32>
    %c0_10 = arith.constant 0 : index
    %c0_11 = arith.constant 0 : index
    %24 = vector.load %arg4[%c0_10, %c0_11] : memref<24x1xf32, #tpu.memory_space<vmem>>, vector<24x1xf32>
    tpu.vector_store %arg4[%c0_10, %c0_11], %23 {strides = array<i32>} : memref<24x1xf32, #tpu.memory_space<vmem>>, vector<24x1xf32>,
    return
  }
  func.func @transform_0(%arg0: i32) -> (i32, i32) {
    %c0_i32 = arith.constant 0 : i32
    %c0_i32_0 = arith.constant 0 : i32
    return %arg0, %c0_i32 : i32, i32
  }
  func.func @transform_1(%arg0: i32) -> (i32, i32) {
    %c0_i32 = arith.constant 0 : i32
    %c0_i32_0 = arith.constant 0 : i32
    return %arg0, %c0_i32 : i32, i32
  }
  func.func @transform_2(%arg0: i32) -> (i32, i32) {
    %c0_i32 = arith.constant 0 : i32
    %c0_i32_0 = arith.constant 0 : i32
    return %arg0, %c0_i32 : i32, i32
  }
  func.func @transform_3(%arg0: i32) -> (i32, i32) {
    %c0_i32 = arith.constant 0 : i32
    %c0_i32_0 = arith.constant 0 : i32
    return %arg0, %c0_i32 : i32, i32
  }
}

</mosaic_0001>

<llo_original>
// kernel: tpu_custom_call.1
$region0: #{tpu_custom_call.1}
  #allocation0 [shape = 'u32[]', space=smem, size = 0x4, offset = 0x4, fixed_abs, tag = 'smem constant byte address 0x4 - core index']
  #allocation1 [shape = 'u32[144,128]{1,0:T(1,128)}', space=vmem, size = 0x12000, scoped, tag = 'internal scratch']
  %s0 = inlined_call_operand.hbm [shape: f32[24,128], index: 0, kind: input, shape index: {}]
  %s1 = inlined_call_operand.hbm [shape: f32[24,128], index: 1, kind: input, shape index: {}]
  %s2 = inlined_call_operand.hbm [shape: f32[24,128], index: 2, kind: input, shape index: {}]
  %s3 = inlined_call_operand.vmem [shape: f32[24,1], index: 3, kind: output, shape index: {}]
  %s4 = sld [smem:[#allocation0]]
  $region34: #{tpu_custom_call.1} parent=0
    _
  %s6 = ssub.s32 1, %s4
  %s7 = scalar_select 0, %s6, %s4
  $region1: #{tpu_custom_call.1} parent=0
    #allocation2 [shape = 'u8[12288]{0}', space=vmem, size = 0x3000, scoped, tag = 'input window, operand 0, single buffered']
    #allocation3 [shape = 's32[1]{0}', space=sflag, size = 0x4, scoped, tag = 'scoped memory for tpu_custom_call.1']
    #allocation4 [shape = 'u8[12288]{0}', space=vmem, size = 0x3000, scoped, tag = 'input window, operand 1, single buffered']
    #allocation5 [shape = 's32[1]{0}', space=sflag, size = 0x4, scoped, tag = 'scoped memory for tpu_custom_call.1']
    #allocation6 [shape = 'u8[12288]{0}', space=vmem, size = 0x3000, scoped, tag = 'input window, operand 2, single buffered']
    %8 = vsyncpa [#allocation3], 0
    %9 = vsyncpa [#allocation5], 0
    // Predicated region
    $region2: #{tpu_custom_call.1} parent=1 // pred_check
      _
    $region3: #{tpu_custom_call.1} parent=1 // pred_check_branch
      %11 = sbr.rel (0) target = $region5
    $region4: #{tpu_custom_call.1} parent=1 // pred_region
      %s13 = ssub.s32 384, 384
      %14 = vsyncadd [#allocation3], %s13
      %s15 = sshll.u32 [#allocation2], 4
      %s16 = int_to_ptr.vmem [resolvable:$true] %s15
      %21 = dma.hbm_to_vmem [thread:$0]  %s0, 384, %s16, [#allocation3], 128, 128, 8
    $region5: #{tpu_custom_call.1} parent=1 // pred_fallthru
      _
    // Predicated region
    $region6: #{tpu_custom_call.1} parent=1 // pred_check
      _
    $region7: #{tpu_custom_call.1} parent=1 // pred_check_branch
      %23 = sbr.rel (0) target = $region9
    $region8: #{tpu_custom_call.1} parent=1 // pred_region
      %s25 = ssub.s32 384, 384
      %26 = vsyncadd [#allocation5], %s25
      %s27 = sshll.u32 [#allocation4], 4
      %s28 = int_to_ptr.vmem [resolvable:$true] %s27
      %33 = dma.hbm_to_vmem [thread:$0]  %s1, 384, %s28, [#allocation5], 128, 128, 8
    $region9: #{tpu_custom_call.1} parent=1 // pred_fallthru
      _
    // Predicated region
    $region10: #{tpu_custom_call.1} parent=1 // pred_check
      _
    $region11: #{tpu_custom_call.1} parent=1 // pred_check_branch
      %35 = sbr.rel (0) target = $region13
    $region12: #{tpu_custom_call.1} parent=1 // pred_region
      %s37 = ssub.s32 384, 384
      %38 = vsyncadd [#allocation5], %s37
      %s39 = sshll.u32 [#allocation6], 4
      %s40 = int_to_ptr.vmem [resolvable:$true] %s39
      %45 = dma.hbm_to_vmem [thread:$0]  %s2, 384, %s40, [#allocation5], 128, 128, 8
    $region13: #{tpu_custom_call.1} parent=1 // pred_fallthru
      _
    // Predicated region
    $region14: #{tpu_custom_call.1} parent=1 // pred_check
      _
    $region15: #{tpu_custom_call.1} parent=1 // pred_check_branch
      %47 = sbr.rel (0) target = $region17
    $region16: #{tpu_custom_call.1} parent=1 // pred_region
      %48 = dma.done [#allocation3], 384
    $region17: #{tpu_custom_call.1} parent=1 // pred_fallthru
      _
    // Predicated region
    $region18: #{tpu_custom_call.1} parent=1 // pred_check
      _
    $region19: #{tpu_custom_call.1} parent=1 // pred_check_branch
      %50 = sbr.rel (0) target = $region21
    $region20: #{tpu_custom_call.1} parent=1 // pred_region
      %51 = dma.done [#allocation5], 384
    $region21: #{tpu_custom_call.1} parent=1 // pred_fallthru
      _
    // Predicated region
    $region22: #{tpu_custom_call.1} parent=1 // pred_check
      _
    $region23: #{tpu_custom_call.1} parent=1 // pred_check_branch
      %53 = sbr.rel (0) target = $region25
    $region24: #{tpu_custom_call.1} parent=1 // pred_region
      %54 = dma.done [#allocation5], 384
    $region25: #{tpu_custom_call.1} parent=1 // pred_fallthru
      _
    %v55 = vld [vmem:[#allocation2] sm:$0xff]
    %v56 = vld [vmem:[#allocation2 + $0x8] sm:$0xff]
    %v57 = vld [vmem:[#allocation2 + $0x10] sm:$0xff]
    %v58 = vld [vmem:[#allocation4] sm:$0xff]
    %v59 = vld [vmem:[#allocation4 + $0x8] sm:$0xff]
    %v60 = vld [vmem:[#allocation4 + $0x10] sm:$0xff]
    %v61 = vld [vmem:[#allocation6] sm:$0xff]
    %v62 = vld [vmem:[#allocation6 + $0x8] sm:$0xff]
    %v63 = vld [vmem:[#allocation6 + $0x10] sm:$0xff]
    %v64 = vmul.f32 %v55, %v58
    %v65 = vmul.f32 %v56, %v59
    %v66 = vmul.f32 %v57, %v60
    %67 = vadd.xlane.f32.xlu0 %v64
    %v68 = vpop.xlane.xlu0 %67
    %69 = vadd.xlane.f32.xlu0 %v65
    %v70 = vpop.xlane.xlu0 %69
    %71 = vadd.xlane.f32.xlu0 %v66
    %v72 = vpop.xlane.xlu0 %71
    %v73 = vmul.f32 %v55, %v61
    %v74 = vmul.f32 %v56, %v62
    %v75 = vmul.f32 %v57, %v63
    %76 = vadd.xlane.f32.xlu0 %v73
    %v77 = vpop.xlane.xlu0 %76
    %78 = vadd.xlane.f32.xlu0 %v74
    %v79 = vpop.xlane.xlu0 %78
    %80 = vadd.xlane.f32.xlu0 %v75
    %v81 = vpop.xlane.xlu0 %80
    %v82 = vmul.f32 %v58, %v58
    %v83 = vmul.f32 %v59, %v59
    %v84 = vmul.f32 %v60, %v60
    %85 = vadd.xlane.f32.xlu0 %v82
    %v86 = vpop.xlane.xlu0 %85
    %87 = vadd.xlane.f32.xlu0 %v83
    %v88 = vpop.xlane.xlu0 %87
    %89 = vadd.xlane.f32.xlu0 %v84
    %v90 = vpop.xlane.xlu0 %89
    %v91 = vmul.f32 %v61, %v61
    %v92 = vmul.f32 %v62, %v62
    %v93 = vmul.f32 %v63, %v63
    %94 = vadd.xlane.f32.xlu0 %v91
    %v95 = vpop.xlane.xlu0 %94
    %96 = vadd.xlane.f32.xlu0 %v92
    %v97 = vpop.xlane.xlu0 %96
    %98 = vadd.xlane.f32.xlu0 %v93
    %v99 = vpop.xlane.xlu0 %98
    %v100 = vrsqrt.pop %v86
    %v101 = vrsqrt.pop %v88
    %v102 = vrsqrt.pop %v90
    %v103 = vmul.f32 %v68, %v100
    %v104 = vmul.f32 %v70, %v101
    %v105 = vmul.f32 %v72, %v102
    %v106 = vrsqrt.pop %v95
    %v107 = vrsqrt.pop %v97
    %v108 = vrsqrt.pop %v99
    %v109 = vmul.f32 %v77, %v106
    %v110 = vmul.f32 %v79, %v107
    %v111 = vmul.f32 %v81, %v108
    %v112 = vsub.f32 %v109, %v103
    %v113 = vsub.f32 %v110, %v104
    %v114 = vsub.f32 %v111, %v105
    %v115 = vadd.f32 %v112, 0.2
    %v116 = vadd.f32 %v113, 0.2
    %v117 = vadd.f32 %v114, 0.2
    %v118 = vmax.f32 %v115, 0.0
    %v119 = vmax.f32 %v116, 0.0
    %v120 = vmax.f32 %v117, 0.0
    %vm121 = vcmask 7168
    %122 = vst.msk [vmem:[%s3] sm:$0xff] %vm121, %v118
    %123 = vst.msk [vmem:[%s3 + $0x8] sm:$0xff] %vm121, %v119
    %124 = vst.msk [vmem:[%s3 + $0x10] sm:$0xff] %vm121, %v120
    // Predicated region
    $region26: #{tpu_custom_call.1} parent=1 // pred_check
      _
    $region27: #{tpu_custom_call.1} parent=1 // pred_check_branch
      %126 = sbr.rel (0) target = $region29
    $region28: #{tpu_custom_call.1} parent=1 // pred_region
      _
    $region29: #{tpu_custom_call.1} parent=1 // pred_fallthru
      _
    // Predicated region
    $region30: #{tpu_custom_call.1} parent=1 // pred_check
      _
    $region31: #{tpu_custom_call.1} parent=1 // pred_check_branch
      %128 = sbr.rel (0) target = $region33
    $region32: #{tpu_custom_call.1} parent=1 // pred_region
      _
    $region33: #{tpu_custom_call.1} parent=1 // pred_fallthru
      _
    %129 = vsyncpa [#allocation3], 1
    %130 = vsyncpa [#allocation5], 1

</llo_original>
